<compile_context>
chip_gen: v5e
topology: v5e:2x2
jax: 0.10.0
libtpu: 0.0.40
codegen_flags: <defaults>
</compile_context>

<pallas_src>
import functools

import jax
import jax.numpy as jnp
import numpy as np
from jax.experimental import pallas as pl
from jax.experimental.pallas import tpu as pltpu


_NUM_CORES = 2            # parallel grid axis (2 TCs on v7x); harmless on 1-TC chips
_BLOCK_BYTES = 8 << 20    # per-step VMEM budget for one (logits + targets) block
_VMEM_LIMIT = 40 << 20    # >= 2 * _BLOCK_BYTES (double buffering) + headroom
_LANE = 128
_ROW_ALIGN = 32           # sublane-safe tile rows for f32(8) / bf16(16) / int8(32)


def _round_up(x, m):
    return ((x + m - 1) // m) * m


def _pick_tile(n, c, itemsize):
    """Largest row tile (multiple of 32) whose block fits the VMEM byte budget.

    VMEM bytes per row = logits row padded to a multiple of 128 lanes plus the
    (tile_n, 1) int32 target block whose lane dim also pads to 128 (512 B/row).
    """
    row_bytes = _round_up(c, _LANE) * itemsize + _LANE * 4
    tile = max(_ROW_ALIGN, (_BLOCK_BYTES // row_bytes) // _ROW_ALIGN * _ROW_ALIGN)
    return min(tile, _round_up(n, _ROW_ALIGN))


def _sce_kernel(x_ref, t_ref, loss_ref, cnt_ref, *,
                n_rows, tile_n, tiles_per_core, ignore_index):
    """One batch tile: accumulate sum of per-row CE losses and valid-row count."""
    p = pl.program_id(0)          # TensorCore / partial-accumulator index
    i = pl.program_id(1)          # batch-tile index within this core

    # Initialize this core's resident partial accumulators on its first tile.
    @pl.when(i == 0)
    def _():
        loss_ref[...] = jnp.zeros_like(loss_ref)
        cnt_ref[...] = jnp.zeros_like(cnt_ref)

    x = x_ref[...].astype(jnp.float32)       # (tile_n, C): native-dtype DMA, f32 math
    t = t_ref[...]                           # (tile_n, 1) int32 class ids

    # Global row ids of this tile; rows >= n_rows are the ragged tail (or the
    # single phantom tile on the second core) and must contribute exactly 0.
    tile_id = p * tiles_per_core + i
    row = tile_id * tile_n + jax.lax.broadcasted_iota(jnp.int32, (tile_n, 1), 0)
    valid = jnp.logical_and(row < n_rows, t != ignore_index)     # (tile_n, 1)
    validf = valid.astype(jnp.float32)

    # Zero-out invalid rows before any math so out-of-bounds garbage can never
    # turn into NaN/Inf (their contribution is masked to 0 below anyway).
    x = jnp.where(valid, x, 0.0)

    # Numerically stable log-sum-exp over the class (lane) axis.
    m = jnp.max(x, axis=-1, keepdims=True)
    lse = m + jnp.log(jnp.sum(jnp.exp(x - m), axis=-1, keepdims=True))

    # x[r, t[r]] without a gather: one-hot compare against a lane iota.
    col = jax.lax.broadcasted_iota(jnp.int32, x.shape, 1)
    picked = jnp.sum(jnp.where(col == t, x, 0.0), axis=-1, keepdims=True)
    # NOTE(v7x): once both TensorCores are busy this kernel can flip
    # EUP/XLU-bound; the two lane reductions above could then be moved onto the
    # idle MXU via jnp.dot with a (C, 1) f32 ones vector.  Kept on the XLU here
    # because HBM remains the binding unit on v5e/v6e.

    per_row = (lse - picked) * validf        # ignored / tail / phantom rows -> 0
    loss_ref[...] += jnp.sum(per_row)
    cnt_ref[...] += jnp.sum(validf)


@functools.partial(jax.jit, static_argnames=("tile_n", "ignore_index"))
def _sce_sums(x, t, tile_n, ignore_index):
    n, c = x.shape
    g = pl.cdiv(n, tile_n)                 # total batch tiles
    tpc = pl.cdiv(g, _NUM_CORES)           # tiles per core (at most one phantom)

    kernel = functools.partial(_sce_kernel, n_rows=n, tile_n=tile_n,
                               tiles_per_core=tpc, ignore_index=ignore_index)

    # Clamp so the (at most one) phantom tile on the second core re-reads an
    # in-bounds block; its rows are masked out in-kernel via `row < n_rows`.
    def row_block(p, i):
        return (jnp.minimum(p * tpc + i, g - 1), 0)

    loss, cnt = pl.pallas_call(
        kernel,
        out_shape=(jax.ShapeDtypeStruct((_NUM_CORES, 1, 1), jnp.float32),
                   jax.ShapeDtypeStruct((_NUM_CORES, 1, 1), jnp.float32)),
        grid_spec=pltpu.PrefetchScalarGridSpec(
            num_scalar_prefetch=0,
            grid=(_NUM_CORES, tpc),
            in_specs=[pl.BlockSpec((tile_n, c), row_block),
                      pl.BlockSpec((tile_n, 1), row_block)],
            out_specs=(pl.BlockSpec((1, 1, 1), lambda p, i: (p, 0, 0)),
                       pl.BlockSpec((1, 1, 1), lambda p, i: (p, 0, 0)))),
        compiler_params=pltpu.CompilerParams(
            dimension_semantics=("parallel", "arbitrary"),
            vmem_limit_bytes=_VMEM_LIMIT),
        cost_estimate=pl.CostEstimate(
            flops=6 * n * c,
            transcendentals=n * c + 2 * n,
            bytes_accessed=n * c * x.dtype.itemsize + n * 4 + 16),
    )(x, t)
    # Sum the per-core partials (tiny) outside the kernel.
    return jnp.sum(loss), jnp.sum(cnt)


def single_cross_entropy(logits, target, *, reduction="mean",
                         ignore_index=-100, tile_rows=None):
    """Cross-entropy for (N, C) logits and (N,) integer class targets."""
    if logits.ndim != 2:
        raise NotImplementedError("expected (N, C) logits")
    n, c = logits.shape
    if tile_rows is not None:
        tile = int(tile_rows)                      # must be a multiple of 32
    else:
        tile = _pick_tile(n, c, logits.dtype.itemsize)
    # TODO(synk): extremely large class counts (a single 32-row block exceeding
    # the VMEM budget) would need class-axis tiling / online logsumexp.
    t = target.astype(jnp.int32).reshape(n, 1)     # tiny; logits stay untouched
    loss_sum, cnt = _sce_sums(logits, t, tile, int(ignore_index))
    if reduction == "sum":
        return loss_sum
    if reduction == "mean":
        return loss_sum / cnt          # 0 valid rows -> NaN, same as PyTorch
    raise NotImplementedError("reduction must be 'mean' or 'sum'")


class SingleCrossEntropyLoss:
    """Pallas mirror of the PyTorch SingleCrossEntropyLoss module (forward)."""

    def __init__(self, reduction="mean", ignore_index=-100):
        # TODO(synk): reduction='none' (per-sample losses) and soft/probability
        # targets are not implemented; only hard class-index targets with
        # 'mean'/'sum' reduction (the module's configuration).
        if reduction not in ("mean", "sum"):
            raise NotImplementedError("only 'mean' and 'sum' reductions")
        self.reduction = reduction
        self.ignore_index = ignore_index

    def __call__(self, input, target):
        return single_cross_entropy(input, target,
                                    reduction=self.reduction,
                                    ignore_index=self.ignore_index)


def _reference(logits, target, ignore_index=-100, reduction="mean"):
    """Plain-JAX reference (matches torch.nn.CrossEntropyLoss semantics)."""
    logp = jax.nn.log_softmax(logits.astype(jnp.float32), axis=-1)
    valid = target != ignore_index
    t_safe = jnp.where(valid, target, 0).astype(jnp.int32)
    picked = jnp.take_along_axis(logp, t_safe[:, None], axis=-1)[:, 0]
    per = jnp.where(valid, -picked, 0.0)
    if reduction == "mean":
        return jnp.sum(per) / jnp.sum(valid.astype(jnp.float32))
    return jnp.sum(per)


if __name__ == "__main__":
    key = jax.random.PRNGKey(0)
    k1, k2, k3, k4, k5, k6 = jax.random.split(key, 6)

    crit = SingleCrossEntropyLoss(reduction="mean", ignore_index=-100)

    # (batch*seq, num_classes) logits, integer targets with ignore_index entries.
    B, T, C = 2, 8, 32
    N = B * T
    logits = jax.random.normal(k1, (N, C), jnp.float32)
    target = jax.random.randint(k2, (N,), 0, C, dtype=jnp.int32)
    target = target.at[3].set(-100).at[10].set(-100)
    loss = jax.block_until_ready(crit(logits, target))
    np.testing.assert_allclose(np.asarray(loss),
                               np.asarray(_reference(logits, target)),
                               rtol=1e-5, atol=1e-6)

    # Ragged batch (N not a multiple of the tile): exercises the in-kernel tail
    # masking path (no jnp.pad of the logits anymore).
    N2 = 13
    logits2 = jax.random.normal(k3, (N2, C), jnp.float32)
    target2 = jax.random.randint(k4, (N2,), 0, C, dtype=jnp.int32)
    loss2 = jax.block_until_ready(crit(logits2, target2))
    np.testing.assert_allclose(np.asarray(loss2),
                               np.asarray(_reference(logits2, target2)),
                               rtol=1e-5, atol=1e-6)

    # Multi-tile + both-partial path with a forced small tile: exercises the
    # (parallel, arbitrary) grid, the phantom-tile clamp, the per-core partial
    # accumulators, and native bf16 streaming with in-kernel upcast.
    N3, C3 = 200, 64
    logits3 = jax.random.normal(k5, (N3, C3), jnp.float32).astype(jnp.bfloat16)
    target3 = jax.random.randint(k6, (N3,), 0, C3, dtype=jnp.int32)
    target3 = target3.at[0].set(-100).at[77].set(-100)
    loss3 = jax.block_until_ready(
        single_cross_entropy(logits3, target3, tile_rows=32))
    ref3 = _reference(logits3.astype(jnp.float32), target3)
    np.testing.assert_allclose(np.asarray(loss3), np.asarray(ref3),
                               rtol=1e-5, atol=1e-5)

    print("KERNEL_OK")
</pallas_src>

<mosaic_0001>
module attributes {stable_mosaic.version = 11 : i64} {
  func.func @_sce_kernel(%arg0: i32, %arg1: i32, %arg2: memref<32x32xf32, #tpu.memory_space<vmem>>, %arg3: memref<32x1xi32, #tpu.memory_space<vmem>>, %arg4: memref<1x1x1xf32, #tpu.memory_space<vmem>>, %arg5: memref<1x1x1xf32, #tpu.memory_space<vmem>>) attributes {dimension_semantics = [#tpu.dimension_semantics<parallel>, #tpu.dimension_semantics<arbitrary>], iteration_bounds = array<i64: 2, 1>, scalar_prefetch = 0 : i64, scratch_operands = 0 : i64, tpu.core_type = #tpu.core_type<tc>, window_params = [{transform_indices = @transform_0, window_bounds = array<i64: 32, 32>}, {transform_indices = @transform_1, window_bounds = array<i64: 32, 1>}, {transform_indices = @transform_2, window_bounds = array<i64: 1, 1, 1>}, {transform_indices = @transform_3, window_bounds = array<i64: 1, 1, 1>}]} {
    %c0_i32 = arith.constant 0 : i32
    %0 = arith.cmpi eq, %arg1, %c0_i32 : i32
    %1 = arith.extui %0 : i1 to i32
    %c0_i32_0 = arith.constant 0 : i32
    %2 = arith.cmpi ne, %1, %c0_i32_0 : i32
    scf.if %2 {
      %cst_22 = arith.constant 0.000000e+00 : f32
      %56 = vector.broadcast %cst_22 : f32 to vector<1x1x1xf32>
      %c0_23 = arith.constant 0 : index
      %c0_24 = arith.constant 0 : index
      %c0_25 = arith.constant 0 : index
      %57 = vector.load %arg4[%c0_23, %c0_24, %c0_25] : memref<1x1x1xf32, #tpu.memory_space<vmem>>, vector<1x1x1xf32>
      tpu.vector_store %arg4[%c0_23, %c0_24, %c0_25], %56 {strides = array<i32>} : memref<1x1x1xf32, #tpu.memory_space<vmem>>, vector<1x1x1xf32>,
      %cst_26 = arith.constant 0.000000e+00 : f32
      %58 = vector.broadcast %cst_26 : f32 to vector<1x1x1xf32>
      %c0_27 = arith.constant 0 : index
      %c0_28 = arith.constant 0 : index
      %c0_29 = arith.constant 0 : index
      %59 = vector.load %arg5[%c0_27, %c0_28, %c0_29] : memref<1x1x1xf32, #tpu.memory_space<vmem>>, vector<1x1x1xf32>
      tpu.vector_store %arg5[%c0_27, %c0_28, %c0_29], %58 {strides = array<i32>} : memref<1x1x1xf32, #tpu.memory_space<vmem>>, vector<1x1x1xf32>,
    } else {
    }
    %c0 = arith.constant 0 : index
    %c0_1 = arith.constant 0 : index
    %3 = vector.load %arg2[%c0, %c0_1] : memref<32x32xf32, #tpu.memory_space<vmem>>, vector<32x32xf32>
    %c0_2 = arith.constant 0 : index
    %c0_3 = arith.constant 0 : index
    %4 = vector.load %arg3[%c0_2, %c0_3] : memref<32x1xi32, #tpu.memory_space<vmem>>, vector<32x1xi32>
    %c1_i32 = arith.constant 1 : i32
    %5 = arith.muli %arg0, %c1_i32 : i32
    %6 = arith.addi %5, %arg1 : i32
    %c32_i32 = arith.constant 32 : i32
    %7 = arith.muli %6, %c32_i32 : i32
    %8 = tpu.iota {dimensions = array<i32: 0>} : vector<32x1xi32>
    %9 = vector.broadcast %7 : i32 to vector<32x1xi32>
    %10 = arith.addi %9, %8 : vector<32x1xi32>
    %c16_i32 = arith.constant 16 : i32
    %11 = vector.broadcast %c16_i32 : i32 to vector<32x1xi32>
    %12 = arith.cmpi slt, %10, %11 : vector<32x1xi32>
    %c-100_i32 = arith.constant -100 : i32
    %13 = vector.broadcast %c-100_i32 : i32 to vector<32x1xi32>
    %14 = arith.cmpi ne, %4, %13 : vector<32x1xi32>
    %15 = arith.andi %12, %14 : vector<32x1xi1>
    %16 = arith.extui %15 : vector<32x1xi1> to vector<32x1xi32>
    %17 = arith.sitofp %16 : vector<32x1xi32> to vector<32x1xf32>
    %cst = arith.constant 0.000000e+00 : f32
    %18 = vector.shape_cast %15 : vector<32x1xi1> to vector<32x1xi1>
    %19 = vector.broadcast %18 : vector<32x1xi1> to vector<32x32xi1>
    %20 = vector.broadcast %cst : f32 to vector<32x32xf32>
    %21 = arith.select %19, %3, %20 : vector<32x32xi1>, vector<32x32xf32>
    %cst_4 = arith.constant dense<0xFF800000> : vector<32xf32>
    %22 = vector.multi_reduction <maximumf>, %21, %cst_4 [1] : vector<32x32xf32> to vector<32xf32>
    %23 = vector.shape_cast %22 : vector<32xf32> to vector<32x1xf32>
    %24 = vector.broadcast %23 : vector<32x1xf32> to vector<32x32xf32>
    %25 = arith.subf %21, %24 : vector<32x32xf32>
    %26 = math.exp %25 : vector<32x32xf32>
    %cst_5 = arith.constant dense<0.000000e+00> : vector<32xf32>
    %27 = vector.multi_reduction <add>, %26, %cst_5 [1] : vector<32x32xf32> to vector<32xf32>
    %28 = vector.shape_cast %27 : vector<32xf32> to vector<32x1xf32>
    %29 = math.log %28 : vector<32x1xf32>
    %30 = arith.addf %23, %29 : vector<32x1xf32>
    %31 = tpu.iota {dimensions = array<i32: 1>} : vector<32x32xi32>
    %32 = vector.broadcast %4 : vector<32x1xi32> to vector<32x32xi32>
    %33 = arith.cmpi eq, %31, %32 : vector<32x32xi32>
    %cst_6 = arith.constant 0.000000e+00 : f32
    %34 = vector.broadcast %cst_6 : f32 to vector<32x32xf32>
    %35 = arith.select %33, %21, %34 : vector<32x32xi1>, vector<32x32xf32>
    %cst_7 = arith.constant dense<0.000000e+00> : vector<32xf32>
    %36 = vector.multi_reduction <add>, %35, %cst_7 [1] : vector<32x32xf32> to vector<32xf32>
    %37 = vector.shape_cast %36 : vector<32xf32> to vector<32x1xf32>
    %38 = arith.subf %30, %37 : vector<32x1xf32>
    %39 = arith.mulf %38, %17 : vector<32x1xf32>
    %c0_8 = arith.constant 0 : index
    %c0_9 = arith.constant 0 : index
    %c0_10 = arith.constant 0 : index
    %40 = vector.load %arg4[%c0_8, %c0_9, %c0_10] : memref<1x1x1xf32, #tpu.memory_space<vmem>>, vector<1x1x1xf32>
    %41 = vector.shape_cast %39 : vector<32x1xf32> to vector<1x32x1xf32>
    %cst_11 = arith.constant dense<0.000000e+00> : vector<1xf32>
    %42 = vector.multi_reduction <add>, %41, %cst_11 [1, 2] : vector<1x32x1xf32> to vector<1xf32>
    %43 = vector.shape_cast %42 : vector<1xf32> to vector<1x1x1xf32>
    %44 = vector.extract %43[0, 0, 0] : f32 from vector<1x1x1xf32>
    %45 = vector.broadcast %44 : f32 to vector<1x1x1xf32>
    %46 = arith.addf %40, %45 : vector<1x1x1xf32>
    %c0_12 = arith.constant 0 : index
    %c0_13 = arith.constant 0 : index
    %c0_14 = arith.constant 0 : index
    %47 = vector.load %arg4[%c0_12, %c0_13, %c0_14] : memref<1x1x1xf32, #tpu.memory_space<vmem>>, vector<1x1x1xf32>
    tpu.vector_store %arg4[%c0_12, %c0_13, %c0_14], %46 {strides = array<i32>} : memref<1x1x1xf32, #tpu.memory_space<vmem>>, vector<1x1x1xf32>,
    %c0_15 = arith.constant 0 : index
    %c0_16 = arith.constant 0 : index
    %c0_17 = arith.constant 0 : index
    %48 = vector.load %arg5[%c0_15, %c0_16, %c0_17] : memref<1x1x1xf32, #tpu.memory_space<vmem>>, vector<1x1x1xf32>
    %49 = vector.shape_cast %17 : vector<32x1xf32> to vector<1x32x1xf32>
    %cst_18 = arith.constant dense<0.000000e+00> : vector<1xf32>
    %50 = vector.multi_reduction <add>, %49, %cst_18 [1, 2] : vector<1x32x1xf32> to vector<1xf32>
    %51 = vector.shape_cast %50 : vector<1xf32> to vector<1x1x1xf32>
    %52 = vector.extract %51[0, 0, 0] : f32 from vector<1x1x1xf32>
    %53 = vector.broadcast %52 : f32 to vector<1x1x1xf32>
    %54 = arith.addf %48, %53 : vector<1x1x1xf32>
    %c0_19 = arith.constant 0 : index
    %c0_20 = arith.constant 0 : index
    %c0_21 = arith.constant 0 : index
    %55 = vector.load %arg5[%c0_19, %c0_20, %c0_21] : memref<1x1x1xf32, #tpu.memory_space<vmem>>, vector<1x1x1xf32>
    tpu.vector_store %arg5[%c0_19, %c0_20, %c0_21], %54 {strides = array<i32>} : memref<1x1x1xf32, #tpu.memory_space<vmem>>, vector<1x1x1xf32>,
    return
  }
  func.func @transform_0(%arg0: i32, %arg1: i32) -> (i32, i32) {
    %c1_i32 = arith.constant 1 : i32
    %0 = arith.muli %arg0, %c1_i32 : i32
    %1 = arith.addi %0, %arg1 : i32
    %c0_i32 = arith.constant 0 : i32
    %2 = arith.minsi %1, %c0_i32 : i32
    %c0_i32_0 = arith.constant 0 : i32
    %c0_i32_1 = arith.constant 0 : i32
    return %2, %c0_i32_0 : i32, i32
  }
  func.func @transform_1(%arg0: i32, %arg1: i32) -> (i32, i32) {
    %c1_i32 = arith.constant 1 : i32
    %0 = arith.muli %arg0, %c1_i32 : i32
    %1 = arith.addi %0, %arg1 : i32
    %c0_i32 = arith.constant 0 : i32
    %2 = arith.minsi %1, %c0_i32 : i32
    %c0_i32_0 = arith.constant 0 : i32
    %c0_i32_1 = arith.constant 0 : i32
    return %2, %c0_i32_0 : i32, i32
  }
  func.func @transform_2(%arg0: i32, %arg1: i32) -> (i32, i32, i32) {
    %c0_i32 = arith.constant 0 : i32
    %c0_i32_0 = arith.constant 0 : i32
    %c0_i32_1 = arith.constant 0 : i32
    return %arg0, %c0_i32, %c0_i32_0 : i32, i32, i32
  }
  func.func @transform_3(%arg0: i32, %arg1: i32) -> (i32, i32, i32) {
    %c0_i32 = arith.constant 0 : i32
    %c0_i32_0 = arith.constant 0 : i32
    %c0_i32_1 = arith.constant 0 : i32
    return %arg0, %c0_i32, %c0_i32_0 : i32, i32, i32
  }
}

</mosaic_0001>

<llo_original>
// kernel: _sce_sums.1
$region0: #{_sce_sums.1}
  #allocation0 [shape = 'u32[]', space=smem, size = 0x4, offset = 0x4, fixed_abs, tag = 'smem constant byte address 0x4 - core index']
  #allocation1 [shape = 'u32[72,128]{1,0:T(1,128)}', space=vmem, size = 0x9000, scoped, tag = 'internal scratch']
  %s0 = inlined_call_operand.vmem [shape: f32[16,32], index: 0, kind: input, shape index: {}]
  %s1 = inlined_call_operand.vmem [shape: s32[16,1], index: 1, kind: input, shape index: {}]
  %s2 = inlined_call_operand.vmem [shape: f32[2,1,1], index: 2, kind: output, shape index: {0}]
  %s3 = inlined_call_operand.vmem [shape: f32[2,1,1], index: 3, kind: output, shape index: {1}]
  %4 = xla_tuple %s2, %s3
  %s5 = sld [smem:[#allocation0]]
  $region53: #{_sce_sums.1} parent=0
    _
  %s7 = ssub.s32 1, %s5
  %s8 = scalar_select 0, %s7, %s5
  loop: start=0, step=1, limit=4
  $region2: #{_sce_sums.1} parent=0 // loop_pre_header
    _
  $region3: #{_sce_sums.1} parent=0 // loop_header
    %s10 = sphi 0, %s14
    %p11 = scmp.ge.s32.totalorder %s10, 4
    %s17 = sphi 0, %s29
    %s18 = sphi 0, %s25
    %s19 = sphi 0, %s17
    %s20 = sphi 0, %s18
    %s21 = sphi 0, %s19
    %s22 = sphi 0, %s20
    %s38 = sphi 0, %s40
    %s41 = sphi 0, %s38
    %s42 = sphi 0, %s41
    %s58 = sphi 0, %s42
    %s70 = sphi 0, %s72
    %s73 = sphi 0, %s70
    %s74 = sphi 0, %s73
    %s90 = sphi 0, %s74
    %s96 = sphi 0, %s98
    %s99 = sphi 0, %s96
    %s100 = sphi 0, %s99
    %s116 = sphi 0, %s100
    %s122 = sphi 0, %s124
    %s125 = sphi 0, %s122
    %s126 = sphi 0, %s125
    %s142 = sphi 0, %s126
  $region4: #{_sce_sums.1} parent=0 // loop_header_branch
    %13 = sbr.rel (%p11) target = $region8
  $region5: #{_sce_sums.1} parent=0 // loop_body
    %s15 = ssub.s32 %s10, 1
    %s16 = ssub.s32 %s10, 2
    %s23 = sadd.s32 1, %s18
    %p24 = scmp.ge.s32.totalorder %s23, 1
    %s25 = scalar_select %p24, 0, %s23
    %s26 = sadd.s32 1, %s17
    %s27 = scalar_select %p24, %s26, %s17
    %p28 = scmp.ge.s32.totalorder %s27, 2
    %s29 = scalar_select %p28, 0, %s27
    %s30 = sadd.s32 %s17, %s18
    %p31 = scmp.lt.s32.totalorder %s30, 0
    %s32 = scalar_select %p31, %s30, 0
    %s33 = sadd.s32 %s29, %s25
    %p34 = scmp.lt.s32.totalorder %s33, 0
    %s35 = scalar_select %p34, %s33, 0
    %s36 = ssub.s32 %s32, %s35
    %p37 = scmp.eq.s32.totalorder %s36, 0
    %s39 = sadd.s32 %s38, 1
    %s40 = scalar_select %p37, %s38, %s39
    %p43 = pneg %p37
    %p44 = scmp.eq.s32.totalorder %s10, 1
    %p45 = por %p43, %p44
    %p46 = scmp.ne.s32.totalorder %s38, %s41
    %p47 = scmp.eq.s32.totalorder %s10, 0
    %p48 = por %p46, %p47
    %p49 = scmp.ne.s32.totalorder %s38, %s41
    %p50 = scmp.eq.s32.totalorder %s15, 1
    %p51 = por %p49, %p50
    %p52 = scmp.ne.s32.totalorder %s41, %s42
    %p53 = scmp.eq.s32.totalorder %s15, 0
    %p54 = por %p52, %p53
    %p55 = scmp.ne.s32.totalorder %s41, %s42
    %p56 = scmp.eq.s32.totalorder %s16, 1
    %p57 = por %p55, %p56
    %p59 = scmp.ne.s32.totalorder %s42, %s58
    %p60 = scmp.eq.s32.totalorder %s16, 0
    %p61 = por %p59, %p60
    %s62 = sadd.s32 %s17, %s18
    %p63 = scmp.lt.s32.totalorder %s62, 0
    %s64 = scalar_select %p63, %s62, 0
    %s65 = sadd.s32 %s29, %s25
    %p66 = scmp.lt.s32.totalorder %s65, 0
    %s67 = scalar_select %p66, %s65, 0
    %s68 = ssub.s32 %s64, %s67
    %p69 = scmp.eq.s32.totalorder %s68, 0
    %s71 = sadd.s32 %s70, 1
    %s72 = scalar_select %p69, %s70, %s71
    %p75 = pneg %p69
    %p76 = scmp.eq.s32.totalorder %s10, 1
    %p77 = por %p75, %p76
    %p78 = scmp.ne.s32.totalorder %s70, %s73
    %p79 = scmp.eq.s32.totalorder %s10, 0
    %p80 = por %p78, %p79
    %p81 = scmp.ne.s32.totalorder %s70, %s73
    %p82 = scmp.eq.s32.totalorder %s15, 1
    %p83 = por %p81, %p82
    %p84 = scmp.ne.s32.totalorder %s73, %s74
    %p85 = scmp.eq.s32.totalorder %s15, 0
    %p86 = por %p84, %p85
    %p87 = scmp.ne.s32.totalorder %s73, %s74
    %p88 = scmp.eq.s32.totalorder %s16, 1
    %p89 = por %p87, %p88
    %p91 = scmp.ne.s32.totalorder %s74, %s90
    %p92 = scmp.eq.s32.totalorder %s16, 0
    %p93 = por %p91, %p92
    %s94 = ssub.s32 %s17, %s29
    %p95 = scmp.eq.s32.totalorder %s94, 0
    %s97 = sadd.s32 %s96, 1
    %s98 = scalar_select %p95, %s96, %s97
    %p101 = pneg %p95
    %p102 = scmp.eq.s32.totalorder %s10, 1
    %p103 = por %p101, %p102
    %p104 = scmp.ne.s32.totalorder %s96, %s99
    %p105 = scmp.eq.s32.totalorder %s10, 0
    %p106 = por %p104, %p105
    %p107 = scmp.ne.s32.totalorder %s96, %s99
    %p108 = scmp.eq.s32.totalorder %s15, 1
    %p109 = por %p107, %p108
    %p110 = scmp.ne.s32.totalorder %s99, %s100
    %p111 = scmp.eq.s32.totalorder %s15, 0
    %p112 = por %p110, %p111
    %p113 = scmp.ne.s32.totalorder %s99, %s100
    %p114 = scmp.eq.s32.totalorder %s16, 1
    %p115 = por %p113, %p114
    %p117 = scmp.ne.s32.totalorder %s100, %s116
    %p118 = scmp.eq.s32.totalorder %s16, 0
    %p119 = por %p117, %p118
    %s120 = ssub.s32 %s17, %s29
    %p121 = scmp.eq.s32.totalorder %s120, 0
    %s123 = sadd.s32 %s122, 1
    %s124 = scalar_select %p121, %s122, %s123
    %p127 = pneg %p121
    %p128 = scmp.eq.s32.totalorder %s10, 1
    %p129 = por %p127, %p128
    %p130 = scmp.ne.s32.totalorder %s122, %s125
    %p131 = scmp.eq.s32.totalorder %s10, 0
    %p132 = por %p130, %p131
    %p133 = scmp.ne.s32.totalorder %s122, %s125
    %p134 = scmp.eq.s32.totalorder %s15, 1
    %p135 = por %p133, %p134
    %p136 = scmp.ne.s32.totalorder %s125, %s126
    %p137 = scmp.eq.s32.totalorder %s15, 0
    %p138 = por %p136, %p137
    %p139 = scmp.ne.s32.totalorder %s125, %s126
    %p140 = scmp.eq.s32.totalorder %s16, 1
    %p141 = por %p139, %p140
    %p143 = scmp.ne.s32.totalorder %s126, %s142
    %p144 = scmp.eq.s32.totalorder %s16, 0
    %p145 = por %p143, %p144
    %p146 = scmp.le.s32.totalorder 1, %s10
    %p147 = scmp.lt.s32.totalorder %s10, 3
    %p148 = pnand %p146, %p147
    %p149 = pneg %p148
    // Predicated region
    $region9: #{_sce_sums.1} parent=5 // pred_check
      _
    $region10: #{_sce_sums.1} parent=5 // pred_check_branch
      %151 = sbr.rel (%p148) target = $region12
    $region11: #{_sce_sums.1} parent=5 // pred_region
      %s152 = ssub.s32 %s10, 1
    $region12: #{_sce_sums.1} parent=5 // pred_fallthru
      _
    %p153 = scmp.lt.s32.totalorder %s10, 2
    // Predicated region
    $region13: #{_sce_sums.1} parent=5 // pred_check
      %p154 = pneg %p153
    $region14: #{_sce_sums.1} parent=5 // pred_check_branch
      %156 = sbr.rel (%p154) target = $region16
    $region15: #{_sce_sums.1} parent=5 // pred_region
      // Predicated region
      $region17: #{_sce_sums.1} parent=15 // pred_check
        %p157 = pneg %p48
      $region18: #{_sce_sums.1} parent=15 // pred_check_branch
        %159 = sbr.rel (%p157) target = $region20
      $region19: #{_sce_sums.1} parent=15 // pred_region
        %s160 = sadd.s32 %s17, %s18
        %p161 = scmp.lt.s32.totalorder %s160, 0
        %s162 = scalar_select %p161, %s160, 0
        %s163 = smul.u32 4, %s162
        %s164 = ssub.s32 2, %s163
        %s165 = smul.u32 8, %s164
        %p166 = scmp.lt.s32.totalorder %s163, 1
        %s167 = scalar_select %p166, %s163, 1
        %s168 = smul.addr %s167, 8
        %s169 = scalar_lea.vmem %s0, %s168
        %s170 = sadd.s32 %s17, %s18
        %p171 = scmp.lt.s32.totalorder %s170, 0
        %s172 = scalar_select %p171, %s170, 0
        %s173 = smul.u32 4, %s172
        %s174 = ssub.s32 2, %s173
        %s175 = smul.u32 8, %s174
      $region20: #{_sce_sums.1} parent=15 // pred_fallthru
        _
      // Predicated region
      $region21: #{_sce_sums.1} parent=15 // pred_check
        %p176 = pneg %p80
      $region22: #{_sce_sums.1} parent=15 // pred_check_branch
        %178 = sbr.rel (%p176) target = $region24
      $region23: #{_sce_sums.1} parent=15 // pred_region
        %s179 = sadd.s32 %s17, %s18
        %p180 = scmp.lt.s32.totalorder %s179, 0
        %s181 = scalar_select %p180, %s179, 0
        %s182 = smul.u32 4, %s181
        %s183 = ssub.s32 2, %s182
        %s184 = smul.u32 8, %s183
        %p185 = scmp.lt.s32.totalorder %s182, 1
        %s186 = scalar_select %p185, %s182, 1
        %s187 = smul.addr %s186, 8
        %s188 = scalar_lea.vmem %s1, %s187
        %s189 = sadd.s32 %s17, %s18
        %p190 = scmp.lt.s32.totalorder %s189, 0
        %s191 = scalar_select %p190, %s189, 0
        %s192 = smul.u32 4, %s191
        %s193 = ssub.s32 2, %s192
        %s194 = smul.u32 8, %s193
      $region24: #{_sce_sums.1} parent=15 // pred_fallthru
        _
    $region16: #{_sce_sums.1} parent=5 // pred_fallthru
      _
    %p195 = scmp.le.s32.totalorder 1, %s10
    %p196 = scmp.lt.s32.totalorder %s10, 3
    %p197 = pnand %p195, %p196
    %p198 = pneg %p197
    // Predicated region
    $region25: #{_sce_sums.1} parent=5 // pred_check
      _
    $region26: #{_sce_sums.1} parent=5 // pred_check_branch
      %200 = sbr.rel (%p197) target = $region28
    $region27: #{_sce_sums.1} parent=5 // pred_region
      %s201 = ssub.s32 %s10, 1
      %s202 = sadd.s32 %s19, %s20
      %p203 = scmp.lt.s32.totalorder %s202, 0
      %s204 = scalar_select %p203, %s202, 0
      %s205 = smul.u32 4, %s204
      %s206 = ssub.s32 2, %s205
      %s207 = smul.u32 8, %s206
      %p208 = scmp.lt.s32.totalorder %s205, 1
      %s209 = scalar_select %p208, %s205, 1
      %s210 = smul.addr %s209, 8
      %s211 = scalar_lea.vmem %s0, %s210
      %p212 = pneg %p54
      %p213 = pneg %p51
      %s214 = sadd.s32 %s19, %s20
      %p215 = scmp.lt.s32.totalorder %s214, 0
      %s216 = scalar_select %p215, %s214, 0
      %s217 = smul.u32 4, %s216
      %s218 = ssub.s32 2, %s217
      %s219 = smul.u32 8, %s218
      %p220 = scmp.lt.s32.totalorder %s217, 1
      %s221 = scalar_select %p220, %s217, 1
      %s222 = smul.addr %s221, 8
      %s223 = scalar_lea.vmem %s1, %s222
      %p224 = pneg %p86
      %p225 = pneg %p83
      %p226 = pneg %p112
      %p227 = pneg %p109
      %p228 = scmp.lt.s32.totalorder %s19, 1
      %s229 = scalar_select %p228, %s19, 1
      %s230 = scalar_lea.vmem %s2, %s229
      %p231 = pneg %p138
      %p232 = pneg %p135
      %p233 = scmp.lt.s32.totalorder %s19, 1
      %s234 = scalar_select %p233, %s19, 1
      %s235 = scalar_lea.vmem %s3, %s234
      %s236 = sadd.s32 %s19, %s20
      %p237 = scmp.lt.s32.totalorder %s236, 0
      %s238 = scalar_select %p237, %s236, 0
      %s239 = smul.u32 4, %s238
      %s240 = ssub.s32 2, %s239
      %s241 = smul.u32 8, %s240
      %p242 = scmp.lt.s32.totalorder %s239, 1
      %s243 = scalar_select %p242, %s239, 1
      %s244 = smul.addr %s243, 8
      %s245 = scalar_lea.vmem %s0, %s244
      %s246 = sadd.s32 %s19, %s20
      %p247 = scmp.lt.s32.totalorder %s246, 0
      %s248 = scalar_select %p247, %s246, 0
      %s249 = smul.u32 4, %s248
      %s250 = ssub.s32 2, %s249
      %s251 = smul.u32 8, %s250
      %s252 = sadd.s32 %s19, %s20
      %p253 = scmp.lt.s32.totalorder %s252, 0
      %s254 = scalar_select %p253, %s252, 0
      %s255 = smul.u32 4, %s254
      %s256 = ssub.s32 2, %s255
      %s257 = smul.u32 8, %s256
      %p258 = scmp.lt.s32.totalorder %s255, 1
      %s259 = scalar_select %p258, %s255, 1
      %s260 = smul.addr %s259, 8
      %s261 = scalar_lea.vmem %s1, %s260
      %s262 = sadd.s32 %s19, %s20
      %p263 = scmp.lt.s32.totalorder %s262, 0
      %s264 = scalar_select %p263, %s262, 0
      %s265 = smul.u32 4, %s264
      %s266 = ssub.s32 2, %s265
      %s267 = smul.u32 8, %s266
      %p268 = scmp.lt.s32.totalorder %s19, 1
      %s269 = scalar_select %p268, %s19, 1
      %s270 = scalar_lea.vmem %s2, %s269
      %p271 = scmp.lt.s32.totalorder %s19, 1
      %s272 = scalar_select %p271, %s19, 1
      %s273 = scalar_lea.vmem %s3, %s272
      %p274 = scmp.eq.s32.totalorder %s20, 0
      // Predicated region
      $region29: #{_sce_sums.1} parent=27 // pred_check
        %p275 = pneg %p274
      $region30: #{_sce_sums.1} parent=27 // pred_check_branch
        %277 = sbr.rel (%p275) target = $region32
      $region31: #{_sce_sums.1} parent=27 // pred_region
        %vm278 = vcmask 0
        %279 = vst.msk [vmem:[%s270] sm:$0x1] %vm278, 0.0
        %280 = vst.msk [vmem:[%s273] sm:$0x1] %vm278, 0.0
      $region32: #{_sce_sums.1} parent=27 // pred_fallthru
        _
      %v281 = vld [vmem:[%s245] sm:$0xff]
      %v282 = vld [vmem:[%s245 + $0x8] sm:$0xff]
      %v283 = vld [vmem:[%s245 + $0x10] sm:$0xff]
      %v284 = vld [vmem:[%s245 + $0x18] sm:$0xff]
      %v285 = vld [vmem:[%s261] sm:$0xff]
      %v286 = vld [vmem:[%s261 + $0x8] sm:$0xff]
      %v287 = vld [vmem:[%s261 + $0x10] sm:$0xff]
      %v288 = vld [vmem:[%s261 + $0x18] sm:$0xff]
      %s289 = sadd.s32 %s19, %s20
      %s290 = smul.u32 %s289, 32
      %v291 = vlaneseq
      %v292 = vshrl.u32 %v291, 7
      %v293 = vadd.s32 %v292, 8
      %v294 = vadd.s32 %v292, 16
      %v295 = vadd.s32 %v292, 24
      %v296 = vstv %s290
      %v297 = vadd.s32 %v296, %v292
      %v298 = vadd.s32 %v296, %v293
      %v299 = vadd.s32 %v296, %v294
      %v300 = vadd.s32 %v296, %v295
      %vm301 = vcmp.lt.s32.totalorder %v297, 16
      %vm302 = vcmp.lt.s32.totalorder %v298, 16
      %vm303 = vcmp.lt.s32.totalorder %v299, 16
      %vm304 = vcmp.lt.s32.totalorder %v300, 16
      %vm305 = vcmp.ne.s32.totalorder %v285, 4294967196
      %vm306 = vcmp.ne.s32.totalorder %v286, 4294967196
      %vm307 = vcmp.ne.s32.totalorder %v287, 4294967196
      %vm308 = vcmp.ne.s32.totalorder %v288, 4294967196
      %vm309 = vmand %vm301, %vm305
      %vm310 = vmand %vm302, %vm306
      %vm311 = vmand %vm303, %vm307
      %vm312 = vmand %vm304, %vm308
      %v313 = vsel %vm309, 1, 0
      %v314 = vsel %vm310, 1, 0
      %v315 = vsel %vm311, 1, 0
      %v316 = vsel %vm312, 1, 0
      %v317 = vcvt.s32.f32 %v313
      %v318 = vcvt.s32.f32 %v314
      %v319 = vcvt.s32.f32 %v315
      %v320 = vcvt.s32.f32 %v316
      %321 = vset.pattern.permute.xlu0 0
      %322 = vperm.xlu0 %321, %v313
      %v323 = vpop.permute.xlu0 %322
      %324 = vset.pattern.permute.xlu0 0
      %325 = vperm.xlu0 %324, %v314
      %v326 = vpop.permute.xlu0 %325
      %327 = vset.pattern.permute.xlu0 0
      %328 = vperm.xlu0 %327, %v315
      %v329 = vpop.permute.xlu0 %328
      %330 = vset.pattern.permute.xlu0 0
      %331 = vperm.xlu0 %330, %v316
      %v332 = vpop.permute.xlu0 %331
      %vm333 = vcmp.eq.s32.totalorder %v323, 1
      %vm334 = vcmp.eq.s32.totalorder %v326, 1
      %vm335 = vcmp.eq.s32.totalorder %v329, 1
      %vm336 = vcmp.eq.s32.totalorder %v332, 1
      %v337 = vsel %vm333, %v281, 0.0
      %v338 = vsel %vm334, %v282, 0.0
      %v339 = vsel %vm335, %v283, 0.0
      %v340 = vsel %vm336, %v284, 0.0
      %vm341 = vcmask 261120
      %v342 = vsel %vm341, %v337, -inf
      %343 = vmax.xlane.f32.xlu0 %v342
      %v344 = vpop.xlane.xlu0 %343
      %v345 = vsel %vm341, %v338, -inf
      %346 = vmax.xlane.f32.xlu0 %v345
      %v347 = vpop.xlane.xlu0 %346
      %v348 = vsel %vm341, %v339, -inf
      %349 = vmax.xlane.f32.xlu0 %v348
      %v350 = vpop.xlane.xlu0 %349
      %v351 = vsel %vm341, %v340, -inf
      %352 = vmax.xlane.f32.xlu0 %v351
      %v353 = vpop.xlane.xlu0 %352
      %v354 = vsub.f32 %v337, %v344
      %v355 = vsub.f32 %v338, %v347
      %v356 = vsub.f32 %v339, %v350
      %v357 = vsub.f32 %v340, %v353
      %v358 = vmul.f32 %v354, 1.442695
      %v359 = vpow.pop %v358
      %v360 = vmul.f32 %v355, 1.442695
      %v361 = vpow.pop %v360
      %v362 = vmul.f32 %v356, 1.442695
      %v363 = vpow.pop %v362
      %v364 = vmul.f32 %v357, 1.442695
      %v365 = vpow.pop %v364
      %v366 = vsel %vm341, %v359, 0.0
      %367 = vadd.xlane.f32.xlu0 %v366
      %v368 = vpop.xlane.xlu0 %367
      %v369 = vsel %vm341, %v361, 0.0
      %370 = vadd.xlane.f32.xlu0 %v369
      %v371 = vpop.xlane.xlu0 %370
      %v372 = vsel %vm341, %v363, 0.0
      %373 = vadd.xlane.f32.xlu0 %v372
      %v374 = vpop.xlane.xlu0 %373
      %v375 = vsel %vm341, %v365, 0.0
      %376 = vadd.xlane.f32.xlu0 %v375
      %v377 = vpop.xlane.xlu0 %376
      %v378 = vlog2.pop %v368
      %v379 = vmul.f32 %v378, 0.6931472
      %v380 = vlog2.pop %v371
      %v381 = vmul.f32 %v380, 0.6931472
      %v382 = vlog2.pop %v374
      %v383 = vmul.f32 %v382, 0.6931472
      %v384 = vlog2.pop %v377
      %v385 = vmul.f32 %v384, 0.6931472
      %v386 = vadd.f32 %v344, %v379
      %v387 = vadd.f32 %v347, %v381
      %v388 = vadd.f32 %v350, %v383
      %v389 = vadd.f32 %v353, %v385
      %v390 = vlaneseq
      %v391 = vand.u32 %v390, 127
      %392 = vset.pattern.permute.xlu0 0
      %393 = vperm.xlu0 %392, %v285
      %v394 = vpop.permute.xlu0 %393
      %395 = vset.pattern.permute.xlu0 0
      %396 = vperm.xlu0 %395, %v286
      %v397 = vpop.permute.xlu0 %396
      %398 = vset.pattern.permute.xlu0 0
      %399 = vperm.xlu0 %398, %v287
      %v400 = vpop.permute.xlu0 %399
      %401 = vset.pattern.permute.xlu0 0
      %402 = vperm.xlu0 %401, %v288
      %v403 = vpop.permute.xlu0 %402
      %vm404 = vcmp.eq.s32.totalorder %v391, %v394
      %vm405 = vcmp.eq.s32.totalorder %v391, %v397
      %vm406 = vcmp.eq.s32.totalorder %v391, %v400
      %vm407 = vcmp.eq.s32.totalorder %v391, %v403
      %v408 = vsel %vm404, %v337, 0.0
      %v409 = vsel %vm405, %v338, 0.0
      %v410 = vsel %vm406, %v339, 0.0
      %v411 = vsel %vm407, %v340, 0.0
      %v412 = vsel %vm341, %v408, 0.0
      %413 = vadd.xlane.f32.xlu0 %v412
      %v414 = vpop.xlane.xlu0 %413
      %v415 = vsel %vm341, %v409, 0.0
      %416 = vadd.xlane.f32.xlu0 %v415
      %v417 = vpop.xlane.xlu0 %416
      %v418 = vsel %vm341, %v410, 0.0
      %419 = vadd.xlane.f32.xlu0 %v418
      %v420 = vpop.xlane.xlu0 %419
      %v421 = vsel %vm341, %v411, 0.0
      %422 = vadd.xlane.f32.xlu0 %v421
      %v423 = vpop.xlane.xlu0 %422
      %v424 = vsub.f32 %v386, %v414
      %v425 = vsub.f32 %v387, %v417
      %v426 = vsub.f32 %v388, %v420
      %v427 = vsub.f32 %v389, %v423
      %v428 = vmul.f32 %v424, %v317
      %v429 = vmul.f32 %v425, %v318
      %v430 = vmul.f32 %v426, %v319
      %v431 = vmul.f32 %v427, %v320
      %v432 = vld [vmem:[%s270] sm:$0x1]
      %vm433 = vcmask 7168
      %v434 = vsel %vm433, %v428, 0.0
      %v435 = vsel %vm433, %v429, 0.0
      %v436 = vadd.f32 %v434, %v435
      %v437 = vsel %vm433, %v430, 0.0
      %v438 = vadd.f32 %v436, %v437
      %v439 = vsel %vm433, %v431, 0.0
      %v440 = vadd.f32 %v438, %v439
      %441 = vadd.xlane.f32.xlu0 %v440
      %v442 = vpop.xlane.xlu0 %441
      %v443 = vrot.slane %v442, 4
      %v444 = vadd.f32 %v442, %v443
      %v445 = vrot.slane %v444, 2
      %v446 = vadd.f32 %v444, %v445
      %v447 = vrot.slane %v446, 1
      %v448 = vadd.f32 %v446, %v447
      %s449 = vtos %v448
      %v450 = vstv %s449
      %v451 = vadd.f32 %v432, %v450
      %vm452 = vcmask 0
      %453 = vst.msk [vmem:[%s270] sm:$0x1] %vm452, %v451
      %v454 = vld [vmem:[%s273] sm:$0x1]
      %v455 = vsel %vm433, %v317, 0.0
      %v456 = vsel %vm433, %v318, 0.0
      %v457 = vadd.f32 %v455, %v456
      %v458 = vsel %vm433, %v319, 0.0
      %v459 = vadd.f32 %v457, %v458
      %v460 = vsel %vm433, %v320, 0.0
      %v461 = vadd.f32 %v459, %v460
      %462 = vadd.xlane.f32.xlu0 %v461
      %v463 = vpop.xlane.xlu0 %462
      %v464 = vrot.slane %v463, 4
      %v465 = vadd.f32 %v463, %v464
      %v466 = vrot.slane %v465, 2
      %v467 = vadd.f32 %v465, %v466
      %v468 = vrot.slane %v467, 1
      %v469 = vadd.f32 %v467, %v468
      %s470 = vtos %v469
      %v471 = vstv %s470
      %v472 = vadd.f32 %v454, %v471
      %473 = vst.msk [vmem:[%s273] sm:$0x1] %vm452, %v472
      %p474 = scmp.lt.s32.totalorder %s19, 1
      %s475 = scalar_select %p474, %s19, 1
      %s476 = scalar_lea.vmem %s2, %s475
      %p477 = scmp.lt.s32.totalorder %s19, 1
      %s478 = scalar_select %p477, %s19, 1
      %s479 = scalar_lea.vmem %s3, %s478
      // Predicated region
      $region33: #{_sce_sums.1} parent=27 // pred_check
        %p480 = pneg %p109
      $region34: #{_sce_sums.1} parent=27 // pred_check_branch
        %482 = sbr.rel (%p480) target = $region36
      $region35: #{_sce_sums.1} parent=27 // pred_region
        _
      $region36: #{_sce_sums.1} parent=27 // pred_fallthru
        _
      // Predicated region
      $region37: #{_sce_sums.1} parent=27 // pred_check
        %p483 = pneg %p135
      $region38: #{_sce_sums.1} parent=27 // pred_check_branch
        %485 = sbr.rel (%p483) target = $region40
      $region39: #{_sce_sums.1} parent=27 // pred_region
        _
      $region40: #{_sce_sums.1} parent=27 // pred_fallthru
        _
    $region28: #{_sce_sums.1} parent=5 // pred_fallthru
      _
    %p486 = scmp.le.s32.totalorder 2, %s10
    // Predicated region
    $region41: #{_sce_sums.1} parent=5 // pred_check
      %p487 = pneg %p486
    $region42: #{_sce_sums.1} parent=5 // pred_check_branch
      %489 = sbr.rel (%p487) target = $region44
    $region43: #{_sce_sums.1} parent=5 // pred_region
      %s490 = ssub.s32 %s10, 2
      // Predicated region
      $region45: #{_sce_sums.1} parent=43 // pred_check
        %p491 = pneg %p115
      $region46: #{_sce_sums.1} parent=43 // pred_check_branch
        %493 = sbr.rel (%p491) target = $region48
      $region47: #{_sce_sums.1} parent=43 // pred_region
        %p494 = scmp.lt.s32.totalorder %s21, 1
        %s495 = scalar_select %p494, %s21, 1
        %s496 = scalar_lea.vmem %s2, %s495
      $region48: #{_sce_sums.1} parent=43 // pred_fallthru
        _
      // Predicated region
      $region49: #{_sce_sums.1} parent=43 // pred_check
        %p497 = pneg %p141
      $region50: #{_sce_sums.1} parent=43 // pred_check_branch
        %499 = sbr.rel (%p497) target = $region52
      $region51: #{_sce_sums.1} parent=43 // pred_region
        %p500 = scmp.lt.s32.totalorder %s21, 1
        %s501 = scalar_select %p500, %s21, 1
        %s502 = scalar_lea.vmem %s3, %s501
      $region52: #{_sce_sums.1} parent=43 // pred_fallthru
        _
    $region44: #{_sce_sums.1} parent=5 // pred_fallthru
      _
  $region6: #{_sce_sums.1} parent=0 // loop_footer
    %s14 = sadd.s32 1, %s10
  $region7: #{_sce_sums.1} parent=0 // loop_footer_branch
    %9 = sbr.rel target = $region3
  $region8: #{_sce_sums.1} parent=0 // loop_exit
    _

</llo_original>
